<compile_context>
chip_gen: v7x
topology: tpu7x:2x2x1
jax: 0.10.0
libtpu: 0.0.40
codegen_flags: <defaults>
</compile_context>

<pallas_src>
import jax
import jax.numpy as jnp
from jax.experimental import pallas as pl
from jax.experimental.pallas import tpu as pltpu

NEG_SLOPE = 0.01  # F.leaky_relu default negative_slope


# --------------------------- fused per-layer kernel ---------------------------------

def make_layer_kernel(src_offsets, src_sizes):
    """Builds the fused HeteroGNNLayer (+ leaky_relu) kernel.

    src_offsets[e]/src_sizes[e]: static row slice of the concatenated
    node-feature matrix holding the source features of relation e.
    """
    wh_offsets = []
    off = 0
    for ns in src_sizes:
        wh_offsets.append(off)
        off += ns

    def kernel(h_ref, a_ref, wt_ref, bt_ref,
               wself_ref, bself_ref, wneigh_ref, bneigh_ref,
               out_ref, wh_ref):
        # 1) per-relation transform Wh_e = X_src_e @ Wt_e + bt_e, staged into one
        #    vertically concatenated (K_total, Dout) VMEM slab via static slices.
        for e in range(len(src_offsets)):
            soff, ns, woff = src_offsets[e], src_sizes[e], wh_offsets[e]
            xs = h_ref[soff:soff + ns, :]
            wh_ref[woff:woff + ns, :] = (
                jnp.dot(xs, wt_ref[e], preferred_element_type=jnp.float32)
                + bt_ref[e])

        # 2) ONE aggregation matmul over all edge types and all dst node types:
        #    row-normalized blocks implement fn.mean, summing across horizontal
        #    blocks implements the 'sum' relation reducer.
        acc = jnp.dot(a_ref[...], wh_ref[...], preferred_element_type=jnp.float32)

        # 3) shared fc_self / fc_neigh projections + residual + leaky_relu,
        #    applied to all node types at once (weights are shared in the module).
        h = h_ref[...]
        rst = (jnp.dot(h, wself_ref[...], preferred_element_type=jnp.float32)
               + bself_ref[...]
               + jnp.dot(acc, wneigh_ref[...], preferred_element_type=jnp.float32)
               + bneigh_ref[...])
        rst = h + rst                                    # h_self + dropout(rst), p=0.0
        out_ref[...] = jnp.where(rst >= 0, rst, NEG_SLOPE * rst).astype(out_ref.dtype)

    return kernel


def hetero_layer(h_cat, a_cat, wt_stack, bt_stack, wself, bself, wneigh, bneigh,
                 *, src_offsets, src_sizes):
    """One HeteroGNNLayer (+ leaky_relu) for ALL node types in a single pallas_call."""
    ntot, din = h_cat.shape
    ktot = a_cat.shape[1]
    dout = wt_stack.shape[-1]
    assert din == dout, "residual connection requires in_size == out_size"
    kernel = make_layer_kernel(tuple(int(o) for o in src_offsets),
                               tuple(int(s) for s in src_sizes))
    # No grid: the whole (tiny) problem fits one VMEM-resident block; every input
    # gets the default whole-array BlockSpec.
    return pl.pallas_call(
        kernel,
        out_shape=jax.ShapeDtypeStruct((ntot, dout), jnp.float32),
        scratch_shapes=[pltpu.VMEM((ktot, dout), jnp.float32)],
    )(h_cat, a_cat, wt_stack, bt_stack, wself, bself, wneigh, bneigh)


# ---------------- parameter init (deterministic, mirrors shapes in __init__) --------

def _xavier_uniform(key, fan_in, fan_out, gain):
    bound = gain * (6.0 / (fan_in + fan_out)) ** 0.5
    return jax.random.uniform(key, (fan_in, fan_out), jnp.float32, -bound, bound)


def _bias(key, fan_in, size):
    bound = 1.0 / (fan_in ** 0.5)
    return jax.random.uniform(key, (size,), jnp.float32, -bound, bound)


def init_params(key, n_layers, etypes, d):
    gain = 2.0 ** 0.5  # calculate_gain('relu')
    layers = []
    for _ in range(n_layers):
        layer = {'fc_trans': {}}
        for et in etypes:
            key, kw, kb = jax.random.split(key, 3)
            layer['fc_trans'][et] = {'w': _xavier_uniform(kw, d, d, gain),
                                     'b': _bias(kb, d, d)}
        key, k1, k2, k3, k4 = jax.random.split(key, 5)
        layer['w_self'] = _xavier_uniform(k1, d, d, gain)
        layer['b_self'] = _bias(k2, d, d)[None, :]
        layer['w_neigh'] = _xavier_uniform(k3, d, d, gain)
        layer['b_neigh'] = _bias(k4, d, d)[None, :]
        layers.append(layer)
    return layers


# ---------------- one-time graph / parameter lowering (hoisted out of forward) ------

def build_graph_arrays(graph, ntype_order, n_nodes):
    """Lower the heterograph to a single block adjacency A_cat (done ONCE).

    graph: {dst_ntype: [(etype, src_ntype, A[N_dst, N_src]), ...]}
    """
    node_off, off = {}, 0
    for nt in ntype_order:
        node_off[nt] = off
        off += n_nodes[nt]
    ntot = off

    relations = []          # (etype, src_ntype, dst_ntype, A)
    for dst in ntype_order:
        for (et, src, A) in graph.get(dst, []):
            relations.append((et, src, dst, A))

    ktot = sum(int(A.shape[1]) for (_, _, _, A) in relations)
    a_cat = jnp.zeros((ntot, ktot), jnp.float32)
    koff = 0
    src_offsets, src_sizes, etypes_per_rel = [], [], []
    for (et, src, dst, A) in relations:
        nd, ns = A.shape
        a_cat = a_cat.at[node_off[dst]:node_off[dst] + nd, koff:koff + ns].set(A)
        src_offsets.append(node_off[src])
        src_sizes.append(int(ns))
        etypes_per_rel.append(et)
        koff += ns
    return a_cat, node_off, src_offsets, src_sizes, etypes_per_rel


def build_layer_stacks(params, etypes_per_rel):
    """Pre-stack per-relation weights once (hoisted out of the forward loop)."""
    stacks = []
    for layer in params:
        wt = jnp.stack([layer['fc_trans'][et]['w'] for et in etypes_per_rel])
        bt = jnp.stack([layer['fc_trans'][et]['b'] for et in etypes_per_rel])[:, None, :]
        stacks.append((wt, bt, layer['w_self'], layer['b_self'],
                       layer['w_neigh'], layer['b_neigh']))
    return stacks


# ---------------- full HeteroGNN forward (one pallas_call per layer) ----------------

def hetero_gnn_forward(layer_stacks, a_cat, h_cat, src_offsets, src_sizes):
    for (wt, bt, wself, bself, wneigh, bneigh) in layer_stacks:
        h_cat = hetero_layer(h_cat, a_cat, wt, bt, wself, bself, wneigh, bneigh,
                             src_offsets=src_offsets, src_sizes=src_sizes)
    return h_cat


# ---------------- pure-JAX reference for correctness check --------------------------

def ref_forward(params, graph, feats):
    h = dict(feats)
    for layer in params:
        new_h = {}
        for ntype, rels in graph.items():
            acc = jnp.zeros_like(h[ntype])
            for (et, src, A) in rels:
                wh = h[src] @ layer['fc_trans'][et]['w'] + layer['fc_trans'][et]['b']
                acc = acc + A @ wh
            xd = h[ntype]
            rst = (xd @ layer['w_self'] + layer['b_self']
                   + acc @ layer['w_neigh'] + layer['b_neigh'])
            rst = xd + rst
            new_h[ntype] = jnp.where(rst >= 0, rst, NEG_SLOPE * rst)
        h = new_h
    return h


# ---------------- graph construction helpers ----------------------------------------

def make_norm_adj(key, n_dst, n_src, p=0.35):
    mask = (jax.random.uniform(key, (n_dst, n_src)) < p).astype(jnp.float32)
    deg = mask.sum(axis=-1, keepdims=True)
    return jnp.where(deg > 0, mask / jnp.maximum(deg, 1.0), 0.0)


if __name__ == "__main__":
    N = 16     # nodes per node type
    D = 128    # in_feats == n_hidden == out_size; 128 -> lane-dense output tiles
    n_layers = 2
    etypes = ['writes', 'cites', 'written_by']

    key = jax.random.PRNGKey(0)
    key, ka1, ka2, ka3, kf1, kf2, kp = jax.random.split(key, 7)

    # heterograph: author --writes--> paper, paper --cites--> paper, paper --written_by--> author
    graph = {
        'paper': [('writes', 'author', make_norm_adj(ka1, N, N)),
                  ('cites', 'paper', make_norm_adj(ka2, N, N))],
        'author': [('written_by', 'paper', make_norm_adj(ka3, N, N))],
    }
    ntype_order = ['paper', 'author']
    n_nodes = {'paper': N, 'author': N}

    feats = {
        'paper': jax.random.normal(kf1, (N, D), jnp.float32),
        'author': jax.random.normal(kf2, (N, D), jnp.float32),
    }

    params = init_params(kp, n_layers, etypes, D)

    # One-time lowering of graph structure and weights (outside the forward loop).
    a_cat, node_off, src_offsets, src_sizes, etypes_per_rel = \
        build_graph_arrays(graph, ntype_order, n_nodes)
    layer_stacks = build_layer_stacks(params, etypes_per_rel)
    h_cat = jnp.concatenate([feats[nt] for nt in ntype_order], axis=0)

    out_cat = hetero_gnn_forward(layer_stacks, a_cat, h_cat, src_offsets, src_sizes)
    out_cat = jax.block_until_ready(out_cat)

    ref = ref_forward(params, graph, feats)
    for nt in ntype_order:
        o = out_cat[node_off[nt]:node_off[nt] + n_nodes[nt]]
        assert jnp.allclose(o, ref[nt], rtol=1e-4, atol=1e-4), nt

    # TODO(synk): attention/pool/GIN/RGCN/GRU/LayerNorm branches of HeteroGNNLayer are
    # config options not used by this HeteroGNN configuration and are not implemented.
    print("KERNEL_OK")
</pallas_src>

<mosaic_0001>
module attributes {stable_mosaic.version = 11 : i64} {
  func.func @kernel(%arg0: memref<32x128xf32, #tpu.memory_space<vmem>>, %arg1: memref<32x48xf32, #tpu.memory_space<vmem>>, %arg2: memref<3x128x128xf32, #tpu.memory_space<vmem>>, %arg3: memref<3x1x128xf32, #tpu.memory_space<vmem>>, %arg4: memref<128x128xf32, #tpu.memory_space<vmem>>, %arg5: memref<1x128xf32, #tpu.memory_space<vmem>>, %arg6: memref<128x128xf32, #tpu.memory_space<vmem>>, %arg7: memref<1x128xf32, #tpu.memory_space<vmem>>, %arg8: memref<32x128xf32, #tpu.memory_space<vmem>>, %arg9: memref<48x128xf32, #tpu.memory_space<vmem>>) attributes {dimension_semantics = [], scalar_prefetch = 0 : i64, scratch_operands = 1 : i64, tpu.core_type = #tpu.core_type<tc>} {
    %c16 = arith.constant 16 : index
    %c0 = arith.constant 0 : index
    %0 = vector.load %arg0[%c16, %c0] : memref<32x128xf32, #tpu.memory_space<vmem>>, vector<16x128xf32>
    %c0_0 = arith.constant 0 : index
    %c0_1 = arith.constant 0 : index
    %c0_2 = arith.constant 0 : index
    %1 = vector.load %arg2[%c0_0, %c0_1, %c0_2] : memref<3x128x128xf32, #tpu.memory_space<vmem>>, vector<1x128x128xf32>
    %2 = vector.shape_cast %1 : vector<1x128x128xf32> to vector<128x128xf32>
    %cst = arith.constant dense<0.000000e+00> : vector<16x128xf32>
    %3 = tpu.matmul %0, %2, %cst {dimension_numbers = #tpu.dot_dimension_numbers<[1], [0], [0], [1], [0, 0, 1, 1], [], []>} : vector<16x128xf32>, vector<128x128xf32>, vector<16x128xf32> -> vector<16x128xf32>
    %c0_3 = arith.constant 0 : index
    %c0_4 = arith.constant 0 : index
    %c0_5 = arith.constant 0 : index
    %4 = vector.load %arg3[%c0_3, %c0_4, %c0_5] : memref<3x1x128xf32, #tpu.memory_space<vmem>>, vector<1x1x128xf32>
    %5 = vector.shape_cast %4 : vector<1x1x128xf32> to vector<1x128xf32>
    %6 = vector.broadcast %5 : vector<1x128xf32> to vector<16x128xf32>
    %7 = arith.addf %3, %6 : vector<16x128xf32>
    %c0_6 = arith.constant 0 : index
    %c0_7 = arith.constant 0 : index
    %8 = vector.load %arg9[%c0_6, %c0_7] : memref<48x128xf32, #tpu.memory_space<vmem>>, vector<16x128xf32>
    tpu.vector_store %arg9[%c0_6, %c0_7], %7 {strides = array<i32>} : memref<48x128xf32, #tpu.memory_space<vmem>>, vector<16x128xf32>,
    %c0_8 = arith.constant 0 : index
    %c0_9 = arith.constant 0 : index
    %9 = vector.load %arg0[%c0_8, %c0_9] : memref<32x128xf32, #tpu.memory_space<vmem>>, vector<16x128xf32>
    %c1 = arith.constant 1 : index
    %c0_10 = arith.constant 0 : index
    %c0_11 = arith.constant 0 : index
    %10 = vector.load %arg2[%c1, %c0_10, %c0_11] : memref<3x128x128xf32, #tpu.memory_space<vmem>>, vector<1x128x128xf32>
    %11 = vector.shape_cast %10 : vector<1x128x128xf32> to vector<128x128xf32>
    %cst_12 = arith.constant dense<0.000000e+00> : vector<16x128xf32>
    %12 = tpu.matmul %9, %11, %cst_12 {dimension_numbers = #tpu.dot_dimension_numbers<[1], [0], [0], [1], [0, 0, 1, 1], [], []>} : vector<16x128xf32>, vector<128x128xf32>, vector<16x128xf32> -> vector<16x128xf32>
    %c1_13 = arith.constant 1 : index
    %c0_14 = arith.constant 0 : index
    %c0_15 = arith.constant 0 : index
    %13 = vector.load %arg3[%c1_13, %c0_14, %c0_15] : memref<3x1x128xf32, #tpu.memory_space<vmem>>, vector<1x1x128xf32>
    %14 = vector.shape_cast %13 : vector<1x1x128xf32> to vector<1x128xf32>
    %15 = vector.broadcast %14 : vector<1x128xf32> to vector<16x128xf32>
    %16 = arith.addf %12, %15 : vector<16x128xf32>
    %c16_16 = arith.constant 16 : index
    %c0_17 = arith.constant 0 : index
    %17 = vector.load %arg9[%c16_16, %c0_17] : memref<48x128xf32, #tpu.memory_space<vmem>>, vector<16x128xf32>
    tpu.vector_store %arg9[%c16_16, %c0_17], %16 {strides = array<i32>} : memref<48x128xf32, #tpu.memory_space<vmem>>, vector<16x128xf32>,
    %c0_18 = arith.constant 0 : index
    %c0_19 = arith.constant 0 : index
    %18 = vector.load %arg0[%c0_18, %c0_19] : memref<32x128xf32, #tpu.memory_space<vmem>>, vector<16x128xf32>
    %c2 = arith.constant 2 : index
    %c0_20 = arith.constant 0 : index
    %c0_21 = arith.constant 0 : index
    %19 = vector.load %arg2[%c2, %c0_20, %c0_21] : memref<3x128x128xf32, #tpu.memory_space<vmem>>, vector<1x128x128xf32>
    %20 = vector.shape_cast %19 : vector<1x128x128xf32> to vector<128x128xf32>
    %cst_22 = arith.constant dense<0.000000e+00> : vector<16x128xf32>
    %21 = tpu.matmul %18, %20, %cst_22 {dimension_numbers = #tpu.dot_dimension_numbers<[1], [0], [0], [1], [0, 0, 1, 1], [], []>} : vector<16x128xf32>, vector<128x128xf32>, vector<16x128xf32> -> vector<16x128xf32>
    %c2_23 = arith.constant 2 : index
    %c0_24 = arith.constant 0 : index
    %c0_25 = arith.constant 0 : index
    %22 = vector.load %arg3[%c2_23, %c0_24, %c0_25] : memref<3x1x128xf32, #tpu.memory_space<vmem>>, vector<1x1x128xf32>
    %23 = vector.shape_cast %22 : vector<1x1x128xf32> to vector<1x128xf32>
    %24 = vector.broadcast %23 : vector<1x128xf32> to vector<16x128xf32>
    %25 = arith.addf %21, %24 : vector<16x128xf32>
    %c32 = arith.constant 32 : index
    %c0_26 = arith.constant 0 : index
    %26 = vector.load %arg9[%c32, %c0_26] : memref<48x128xf32, #tpu.memory_space<vmem>>, vector<16x128xf32>
    tpu.vector_store %arg9[%c32, %c0_26], %25 {strides = array<i32>} : memref<48x128xf32, #tpu.memory_space<vmem>>, vector<16x128xf32>,
    %c0_27 = arith.constant 0 : index
    %c0_28 = arith.constant 0 : index
    %27 = vector.load %arg1[%c0_27, %c0_28] : memref<32x48xf32, #tpu.memory_space<vmem>>, vector<32x48xf32>
    %c0_29 = arith.constant 0 : index
    %c0_30 = arith.constant 0 : index
    %28 = vector.load %arg9[%c0_29, %c0_30] : memref<48x128xf32, #tpu.memory_space<vmem>>, vector<48x128xf32>
    %cst_31 = arith.constant dense<0.000000e+00> : vector<32x128xf32>
    %29 = tpu.matmul %27, %28, %cst_31 {dimension_numbers = #tpu.dot_dimension_numbers<[1], [0], [0], [1], [0, 0, 1, 1], [], []>} : vector<32x48xf32>, vector<48x128xf32>, vector<32x128xf32> -> vector<32x128xf32>
    %c0_32 = arith.constant 0 : index
    %c0_33 = arith.constant 0 : index
    %30 = vector.load %arg0[%c0_32, %c0_33] : memref<32x128xf32, #tpu.memory_space<vmem>>, vector<32x128xf32>
    %c0_34 = arith.constant 0 : index
    %c0_35 = arith.constant 0 : index
    %31 = vector.load %arg4[%c0_34, %c0_35] : memref<128x128xf32, #tpu.memory_space<vmem>>, vector<128x128xf32>
    %cst_36 = arith.constant dense<0.000000e+00> : vector<32x128xf32>
    %32 = tpu.matmul %30, %31, %cst_36 {dimension_numbers = #tpu.dot_dimension_numbers<[1], [0], [0], [1], [0, 0, 1, 1], [], []>} : vector<32x128xf32>, vector<128x128xf32>, vector<32x128xf32> -> vector<32x128xf32>
    %c0_37 = arith.constant 0 : index
    %c0_38 = arith.constant 0 : index
    %33 = vector.load %arg5[%c0_37, %c0_38] : memref<1x128xf32, #tpu.memory_space<vmem>>, vector<1x128xf32>
    %34 = vector.broadcast %33 : vector<1x128xf32> to vector<32x128xf32>
    %35 = arith.addf %32, %34 : vector<32x128xf32>
    %c0_39 = arith.constant 0 : index
    %c0_40 = arith.constant 0 : index
    %36 = vector.load %arg6[%c0_39, %c0_40] : memref<128x128xf32, #tpu.memory_space<vmem>>, vector<128x128xf32>
    %cst_41 = arith.constant dense<0.000000e+00> : vector<32x128xf32>
    %37 = tpu.matmul %29, %36, %cst_41 {dimension_numbers = #tpu.dot_dimension_numbers<[1], [0], [0], [1], [0, 0, 1, 1], [], []>} : vector<32x128xf32>, vector<128x128xf32>, vector<32x128xf32> -> vector<32x128xf32>
    %38 = arith.addf %35, %37 : vector<32x128xf32>
    %c0_42 = arith.constant 0 : index
    %c0_43 = arith.constant 0 : index
    %39 = vector.load %arg7[%c0_42, %c0_43] : memref<1x128xf32, #tpu.memory_space<vmem>>, vector<1x128xf32>
    %40 = vector.broadcast %39 : vector<1x128xf32> to vector<32x128xf32>
    %41 = arith.addf %38, %40 : vector<32x128xf32>
    %42 = arith.addf %30, %41 : vector<32x128xf32>
    %cst_44 = arith.constant 0.000000e+00 : f32
    %43 = vector.broadcast %cst_44 : f32 to vector<32x128xf32>
    %44 = arith.cmpf oge, %42, %43 : vector<32x128xf32>
    %cst_45 = arith.constant 0.00999999977 : f32
    %45 = vector.broadcast %cst_45 : f32 to vector<32x128xf32>
    %46 = arith.mulf %45, %42 : vector<32x128xf32>
    %47 = arith.select %44, %42, %46 : vector<32x128xi1>, vector<32x128xf32>
    %c0_46 = arith.constant 0 : index
    %c0_47 = arith.constant 0 : index
    %48 = vector.load %arg8[%c0_46, %c0_47] : memref<32x128xf32, #tpu.memory_space<vmem>>, vector<32x128xf32>
    tpu.vector_store %arg8[%c0_46, %c0_47], %47 {strides = array<i32>} : memref<32x128xf32, #tpu.memory_space<vmem>>, vector<32x128xf32>,
    return
  }
}

</mosaic_0001>

<llo_original>
// kernel: tpu_custom_call.1
$region0: #{tpu_custom_call.1}
  #allocation0 [shape = 'u32[]', space=smem, size = 0x4, offset = 0x4, fixed_abs, tag = 'smem constant byte address 0x4 - core index']
  #allocation1 [shape = 'u32[144,128]{1,0:T(1,128)}', space=vmem, size = 0x12000, scoped, tag = 'internal scratch']
  #allocation2 [shape = 'f32[48,128]{1,0:T(8,128)}', space=vmem, size = 0x6000, scoped, tag = 'scratch operand']
  %s0 = inlined_call_operand.hbm [shape: f32[32,128], index: 0, kind: input, shape index: {}]
  %s1 = inlined_call_operand.hbm [shape: f32[32,48], index: 1, kind: input, shape index: {}]
  %s2 = inlined_call_operand.hbm [shape: f32[3,128,128], index: 2, kind: input, shape index: {}]
  %s3 = inlined_call_operand.vmem [shape: f32[3,1,128], index: 3, kind: input, shape index: {}]
  %s4 = inlined_call_operand.hbm [shape: f32[128,128], index: 4, kind: input, shape index: {}]
  %s5 = inlined_call_operand.vmem [shape: f32[1,128], index: 5, kind: input, shape index: {}]
  %s6 = inlined_call_operand.hbm [shape: f32[128,128], index: 6, kind: input, shape index: {}]
  %s7 = inlined_call_operand.vmem [shape: f32[1,128], index: 7, kind: input, shape index: {}]
  %s8 = inlined_call_operand.hbm [shape: f32[32,128], index: 8, kind: output, shape index: {}]
  %s9 = sld [smem:[#allocation0]]
  $region62: #{tpu_custom_call.1} parent=0
    _
  %s11 = ssub.s32 1, %s9
  %s12 = scalar_select 0, %s11, %s9
  $region1: #{tpu_custom_call.1} parent=0
    #allocation3 [shape = 'u8[16384]{0}', space=vmem, size = 0x4000, scoped, tag = 'input window, operand 0, single buffered']
    #allocation4 [shape = 's32[1]{0}', space=sflag, size = 0x4, scoped, tag = 'scoped memory for tpu_custom_call.1']
    #allocation5 [shape = 's32[1]{0}', space=sflag, size = 0x4, scoped, tag = 'scoped memory for tpu_custom_call.1']
    #allocation6 [shape = 'u8[16384]{0}', space=vmem, size = 0x4000, scoped, tag = 'input window, operand 1, single buffered']
    #allocation7 [shape = 's32[1]{0}', space=sflag, size = 0x4, scoped, tag = 'scoped memory for tpu_custom_call.1']
    #allocation8 [shape = 'u8[196608]{0}', space=vmem, size = 0x30000, scoped, tag = 'input window, operand 2, single buffered']
    #allocation9 [shape = 'u8[65536]{0}', space=vmem, size = 0x10000, scoped, tag = 'input window, operand 4, single buffered']
    #allocation10 [shape = 's32[1]{0}', space=sflag, size = 0x4, scoped, tag = 'scoped memory for tpu_custom_call.1']
    #allocation11 [shape = 'u8[65536]{0}', space=vmem, size = 0x10000, scoped, tag = 'input window, operand 6, single buffered']
    #allocation12 [shape = 'u8[16384]{0}', space=vmem, size = 0x4000, scoped, tag = 'output window, operand 0, single buffered']
    %13 = vsyncpa [#allocation4], 0
    %14 = vsyncpa [#allocation7], 0
    %15 = vsyncpa [#allocation10], 0
    %16 = vsyncpa [#allocation5], 0
    // Predicated region
    $region2: #{tpu_custom_call.1} parent=1 // pred_check
      _
    $region3: #{tpu_custom_call.1} parent=1 // pred_check_branch
      %18 = sbr.rel (0) target = $region5
    $region4: #{tpu_custom_call.1} parent=1 // pred_region
      %s20 = ssub.s32 512, 512
      %21 = vsyncadd [#allocation4], %s20
      %s22 = sshll.u32 [#allocation3], 4
      %s23 = int_to_ptr.vmem [resolvable:$true] %s22
      %28 = dma.hbm_to_vmem [thread:$0]  %s0, 512, %s23, [#allocation4], 128, 128, 8
    $region5: #{tpu_custom_call.1} parent=1 // pred_fallthru
      _
    // Predicated region
    $region6: #{tpu_custom_call.1} parent=1 // pred_check
      _
    $region7: #{tpu_custom_call.1} parent=1 // pred_check_branch
      %30 = sbr.rel (0) target = $region9
    $region8: #{tpu_custom_call.1} parent=1 // pred_region
      %s32 = ssub.s32 512, 512
      %33 = vsyncadd [#allocation7], %s32
      %s34 = sshll.u32 [#allocation6], 4
      %s35 = int_to_ptr.vmem [resolvable:$true] %s34
      %40 = dma.hbm_to_vmem [thread:$0]  %s1, 512, %s35, [#allocation7], 128, 128, 8
    $region9: #{tpu_custom_call.1} parent=1 // pred_fallthru
      _
    // Predicated region
    $region10: #{tpu_custom_call.1} parent=1 // pred_check
      _
    $region11: #{tpu_custom_call.1} parent=1 // pred_check_branch
      %42 = sbr.rel (0) target = $region13
    $region12: #{tpu_custom_call.1} parent=1 // pred_region
      %s44 = ssub.s32 6144, 6144
      %45 = vsyncadd [#allocation7], %s44
      %s46 = sshll.u32 [#allocation8], 4
      %s47 = int_to_ptr.vmem [resolvable:$true] %s46
      %52 = dma.hbm_to_vmem [thread:$0]  %s2, 6144, %s47, [#allocation7], 128, 128, 8
    $region13: #{tpu_custom_call.1} parent=1 // pred_fallthru
      _
    // Predicated region
    $region14: #{tpu_custom_call.1} parent=1 // pred_check
      _
    $region15: #{tpu_custom_call.1} parent=1 // pred_check_branch
      %54 = sbr.rel (0) target = $region17
    $region16: #{tpu_custom_call.1} parent=1 // pred_region
      _
    $region17: #{tpu_custom_call.1} parent=1 // pred_fallthru
      _
    // Predicated region
    $region18: #{tpu_custom_call.1} parent=1 // pred_check
      _
    $region19: #{tpu_custom_call.1} parent=1 // pred_check_branch
      %56 = sbr.rel (0) target = $region21
    $region20: #{tpu_custom_call.1} parent=1 // pred_region
      %s58 = ssub.s32 2048, 2048
      %59 = vsyncadd [#allocation10], %s58
      %s60 = sshll.u32 [#allocation9], 4
      %s61 = int_to_ptr.vmem [resolvable:$true] %s60
      %66 = dma.hbm_to_vmem [thread:$0]  %s4, 2048, %s61, [#allocation10], 128, 128, 8
    $region21: #{tpu_custom_call.1} parent=1 // pred_fallthru
      _
    // Predicated region
    $region22: #{tpu_custom_call.1} parent=1 // pred_check
      _
    $region23: #{tpu_custom_call.1} parent=1 // pred_check_branch
      %68 = sbr.rel (0) target = $region25
    $region24: #{tpu_custom_call.1} parent=1 // pred_region
      _
    $region25: #{tpu_custom_call.1} parent=1 // pred_fallthru
      _
    // Predicated region
    $region26: #{tpu_custom_call.1} parent=1 // pred_check
      _
    $region27: #{tpu_custom_call.1} parent=1 // pred_check_branch
      %70 = sbr.rel (0) target = $region29
    $region28: #{tpu_custom_call.1} parent=1 // pred_region
      %s72 = ssub.s32 2048, 2048
      %73 = vsyncadd [#allocation10], %s72
      %s74 = sshll.u32 [#allocation11], 4
      %s75 = int_to_ptr.vmem [resolvable:$true] %s74
      %80 = dma.hbm_to_vmem [thread:$0]  %s6, 2048, %s75, [#allocation10], 128, 128, 8
    $region29: #{tpu_custom_call.1} parent=1 // pred_fallthru
      _
    // Predicated region
    $region30: #{tpu_custom_call.1} parent=1 // pred_check
      _
    $region31: #{tpu_custom_call.1} parent=1 // pred_check_branch
      %82 = sbr.rel (0) target = $region33
    $region32: #{tpu_custom_call.1} parent=1 // pred_region
      _
    $region33: #{tpu_custom_call.1} parent=1 // pred_fallthru
      _
    // Predicated region
    $region34: #{tpu_custom_call.1} parent=1 // pred_check
      _
    $region35: #{tpu_custom_call.1} parent=1 // pred_check_branch
      %84 = sbr.rel (0) target = $region37
    $region36: #{tpu_custom_call.1} parent=1 // pred_region
      %85 = dma.done [#allocation4], 512
    $region37: #{tpu_custom_call.1} parent=1 // pred_fallthru
      _
    // Predicated region
    $region38: #{tpu_custom_call.1} parent=1 // pred_check
      _
    $region39: #{tpu_custom_call.1} parent=1 // pred_check_branch
      %87 = sbr.rel (0) target = $region41
    $region40: #{tpu_custom_call.1} parent=1 // pred_region
      %88 = dma.done [#allocation7], 512
    $region41: #{tpu_custom_call.1} parent=1 // pred_fallthru
      _
    // Predicated region
    $region42: #{tpu_custom_call.1} parent=1 // pred_check
      _
    $region43: #{tpu_custom_call.1} parent=1 // pred_check_branch
      %90 = sbr.rel (0) target = $region45
    $region44: #{tpu_custom_call.1} parent=1 // pred_region
      %91 = dma.done [#allocation7], 6144
    $region45: #{tpu_custom_call.1} parent=1 // pred_fallthru
      _
    // Predicated region
    $region46: #{tpu_custom_call.1} parent=1 // pred_check
      _
    $region47: #{tpu_custom_call.1} parent=1 // pred_check_branch
      %93 = sbr.rel (0) target = $region49
    $region48: #{tpu_custom_call.1} parent=1 // pred_region
      %94 = dma.done [#allocation10], 2048
    $region49: #{tpu_custom_call.1} parent=1 // pred_fallthru
      _
    // Predicated region
    $region50: #{tpu_custom_call.1} parent=1 // pred_check
      _
    $region51: #{tpu_custom_call.1} parent=1 // pred_check_branch
      %96 = sbr.rel (0) target = $region53
    $region52: #{tpu_custom_call.1} parent=1 // pred_region
      %97 = dma.done [#allocation10], 2048
    $region53: #{tpu_custom_call.1} parent=1 // pred_fallthru
      _
    %v98 = vld [vmem:[#allocation3 + $0x10] sm:$0xff]
    %v99 = vld [vmem:[#allocation3 + $0x18] sm:$0xff]
    %v100 = vld [vmem:[#allocation8] sm:$0xff]
    %v101 = vld [vmem:[#allocation8 + $0x8] sm:$0xff]
    %v102 = vld [vmem:[#allocation8 + $0x10] sm:$0xff]
    %v103 = vld [vmem:[#allocation8 + $0x18] sm:$0xff]
    %v104 = vld [vmem:[#allocation8 + $0x20] sm:$0xff]
    %v105 = vld [vmem:[#allocation8 + $0x28] sm:$0xff]
    %v106 = vld [vmem:[#allocation8 + $0x30] sm:$0xff]
    %v107 = vld [vmem:[#allocation8 + $0x38] sm:$0xff]
    %v108 = vld [vmem:[#allocation8 + $0x40] sm:$0xff]
    %v109 = vld [vmem:[#allocation8 + $0x48] sm:$0xff]
    %v110 = vld [vmem:[#allocation8 + $0x50] sm:$0xff]
    %v111 = vld [vmem:[#allocation8 + $0x58] sm:$0xff]
    %v112 = vld [vmem:[#allocation8 + $0x60] sm:$0xff]
    %v113 = vld [vmem:[#allocation8 + $0x68] sm:$0xff]
    %v114 = vld [vmem:[#allocation8 + $0x70] sm:$0xff]
    %v115 = vld [vmem:[#allocation8 + $0x78] sm:$0xff]
    %v116 = vld [vmem:[%s3] sm:$0x1]
    %v118 = vlaneseq
    %v119 = vshrl.u32 %v118, 7
    %v120 = vsub.s32 0, %v119
    %v121 = vrot.slane %v116, %v120
    %123 = vmatprep.subr.mxu0 0.0
    %124 = vmatpush1.msra.mxu0 %v100
    %125 = vmatprep.subr.mxu0 0.0
    %126 = vmatpush1.msra.mxu0 %v101
    %127 = vmatprep.subr.mxu0 0.0
    %128 = vmatpush1.msra.mxu0 %v102
    %129 = vmatprep.subr.mxu0 0.0
    %130 = vmatpush1.msra.mxu0 %v103
    %131 = vmatprep.subr.mxu0 0.0
    %132 = vmatpush1.msra.mxu0 %v104
    %133 = vmatprep.subr.mxu0 0.0
    %134 = vmatpush1.msra.mxu0 %v105
    %135 = vmatprep.subr.mxu0 0.0
    %136 = vmatpush1.msra.mxu0 %v106
    %137 = vmatprep.subr.mxu0 0.0
    %138 = vmatpush1.msra.mxu0 %v107
    %139 = vmatprep.subr.mxu0 0.0
    %140 = vmatpush1.msra.mxu0 %v108
    %141 = vmatprep.subr.mxu0 0.0
    %142 = vmatpush1.msra.mxu0 %v109
    %143 = vmatprep.subr.mxu0 0.0
    %144 = vmatpush1.msra.mxu0 %v110
    %145 = vmatprep.subr.mxu0 0.0
    %146 = vmatpush1.msra.mxu0 %v111
    %147 = vmatprep.subr.mxu0 0.0
    %148 = vmatpush1.msra.mxu0 %v112
    %149 = vmatprep.subr.mxu0 0.0
    %150 = vmatpush1.msra.mxu0 %v113
    %151 = vmatprep.subr.mxu0 0.0
    %152 = vmatpush1.msra.mxu0 %v114
    %153 = vmatprep.subr.mxu0 0.0
    %154 = vmatpush1.msra.mxu0 %v115
    %155 = vmatprep.subr.mxu0 0.0
    %156 = vmatpush1.msra.mxu0 0.0
    %157 = vmatprep.subr.mxu0 0.0
    %158 = vmatpush1.msra.mxu0 0.0
    %159 = vmatprep.subr.mxu0 0.0
    %160 = vmatpush1.msra.mxu0 0.0
    %161 = vmatprep.subr.mxu0 0.0
    %162 = vmatpush1.msra.mxu0 0.0
    %163 = vmatprep.subr.mxu0 0.0
    %164 = vmatpush1.msra.mxu0 0.0
    %165 = vmatprep.subr.mxu0 0.0
    %166 = vmatpush1.msra.mxu0 0.0
    %167 = vmatprep.subr.mxu0 0.0
    %168 = vmatpush1.msra.mxu0 0.0
    %169 = vmatprep.subr.mxu0 0.0
    %170 = vmatpush1.msra.mxu0 0.0
    %171 = vmatprep.subr.mxu0 0.0
    %172 = vmatpush1.msra.mxu0 0.0
    %173 = vmatprep.subr.mxu0 0.0
    %174 = vmatpush1.msra.mxu0 0.0
    %175 = vmatprep.subr.mxu0 0.0
    %176 = vmatpush1.msra.mxu0 0.0
    %177 = vmatprep.subr.mxu0 0.0
    %178 = vmatpush1.msra.mxu0 0.0
    %179 = vmatprep.subr.mxu0 0.0
    %180 = vmatpush1.msra.mxu0 0.0
    %181 = vmatprep.subr.mxu0 0.0
    %182 = vmatpush1.msra.mxu0 0.0
    %183 = vmatprep.subr.mxu0 0.0
    %184 = vmatpush1.msra.mxu0 0.0
    %185 = vmatprep.subr.mxu0 0.0
    %186 = vmatpush1.msra.mxu0 0.0
    %187 = vmatprep.mubr.f32.mxu0 0.0
    %188 = vmatmul.mubr.f32.gmra.mrb[0].mxu0 %v98
    %v189 = vpop.f32.mrb[0].mxu0
    %v190 = vadd.f32 %v121, %v189
    %v191 = vpop.f32.mrb[0].mxu0
    %192 = vmatprep.mubr.f32.mxu0 0.0
    %193 = vmatmul.mubr.f32.gmra.mrb[0].mxu0 %v99
    %v194 = vpop.f32.mrb[0].mxu0
    %v195 = vadd.f32 %v121, %v194
    %v196 = vpop.f32.mrb[0].mxu0
    %197 = vdwg.mxu0
    %198 = vst [vmem:[#allocation2] sm:$0xff] %v190
    %199 = vst [vmem:[#allocation2 + $0x8] sm:$0xff] %v195
    %v200 = vld [vmem:[#allocation3] sm:$0xff]
    %v201 = vld [vmem:[#allocation3 + $0x8] sm:$0xff]
    %s202 = scalar_lea.vmem [#allocation8], 128
    %v203 = vld [vmem:[%s202] sm:$0xff]
    %v204 = vld [vmem:[%s202 + $0x8] sm:$0xff]
    %v205 = vld [vmem:[%s202 + $0x10] sm:$0xff]
    %v206 = vld [vmem:[%s202 + $0x18] sm:$0xff]
    %v207 = vld [vmem:[%s202 + $0x20] sm:$0xff]
    %v208 = vld [vmem:[%s202 + $0x28] sm:$0xff]
    %v209 = vld [vmem:[%s202 + $0x30] sm:$0xff]
    %v210 = vld [vmem:[%s202 + $0x38] sm:$0xff]
    %v211 = vld [vmem:[%s202 + $0x40] sm:$0xff]
    %v212 = vld [vmem:[%s202 + $0x48] sm:$0xff]
    %v213 = vld [vmem:[%s202 + $0x50] sm:$0xff]
    %v214 = vld [vmem:[%s202 + $0x58] sm:$0xff]
    %v215 = vld [vmem:[%s202 + $0x60] sm:$0xff]
    %v216 = vld [vmem:[%s202 + $0x68] sm:$0xff]
    %v217 = vld [vmem:[%s202 + $0x70] sm:$0xff]
    %v218 = vld [vmem:[%s202 + $0x78] sm:$0xff]
    %s219 = scalar_lea.vmem %s3, 1
    %v220 = vld [vmem:[%s219] sm:$0x1]
    %v222 = vlaneseq
    %v223 = vshrl.u32 %v222, 7
    %v224 = vsub.s32 0, %v223
    %v225 = vrot.slane %v220, %v224
    %227 = vmatprep.subr.mxu0 0.0
    %228 = vmatpush1.msra.mxu0 %v203
    %229 = vmatprep.subr.mxu0 0.0
    %230 = vmatpush1.msra.mxu0 %v204
    %231 = vmatprep.subr.mxu0 0.0
    %232 = vmatpush1.msra.mxu0 %v205
    %233 = vmatprep.subr.mxu0 0.0
    %234 = vmatpush1.msra.mxu0 %v206
    %235 = vmatprep.subr.mxu0 0.0
    %236 = vmatpush1.msra.mxu0 %v207
    %237 = vmatprep.subr.mxu0 0.0
    %238 = vmatpush1.msra.mxu0 %v208
    %239 = vmatprep.subr.mxu0 0.0
    %240 = vmatpush1.msra.mxu0 %v209
    %241 = vmatprep.subr.mxu0 0.0
    %242 = vmatpush1.msra.mxu0 %v210
    %243 = vmatprep.subr.mxu0 0.0
    %244 = vmatpush1.msra.mxu0 %v211
    %245 = vmatprep.subr.mxu0 0.0
    %246 = vmatpush1.msra.mxu0 %v212
    %247 = vmatprep.subr.mxu0 0.0
    %248 = vmatpush1.msra.mxu0 %v213
    %249 = vmatprep.subr.mxu0 0.0
    %250 = vmatpush1.msra.mxu0 %v214
    %251 = vmatprep.subr.mxu0 0.0
    %252 = vmatpush1.msra.mxu0 %v215
    %253 = vmatprep.subr.mxu0 0.0
    %254 = vmatpush1.msra.mxu0 %v216
    %255 = vmatprep.subr.mxu0 0.0
    %256 = vmatpush1.msra.mxu0 %v217
    %257 = vmatprep.subr.mxu0 0.0
    %258 = vmatpush1.msra.mxu0 %v218
    %259 = vmatprep.subr.mxu0 0.0
    %260 = vmatpush1.msra.mxu0 0.0
    %261 = vmatprep.subr.mxu0 0.0
    %262 = vmatpush1.msra.mxu0 0.0
    %263 = vmatprep.subr.mxu0 0.0
    %264 = vmatpush1.msra.mxu0 0.0
    %265 = vmatprep.subr.mxu0 0.0
    %266 = vmatpush1.msra.mxu0 0.0
    %267 = vmatprep.subr.mxu0 0.0
    %268 = vmatpush1.msra.mxu0 0.0
    %269 = vmatprep.subr.mxu0 0.0
    %270 = vmatpush1.msra.mxu0 0.0
    %271 = vmatprep.subr.mxu0 0.0
    %272 = vmatpush1.msra.mxu0 0.0
    %273 = vmatprep.subr.mxu0 0.0
    %274 = vmatpush1.msra.mxu0 0.0
    %275 = vmatprep.subr.mxu0 0.0
    %276 = vmatpush1.msra.mxu0 0.0
    %277 = vmatprep.subr.mxu0 0.0
    %278 = vmatpush1.msra.mxu0 0.0
    %279 = vmatprep.subr.mxu0 0.0
    %280 = vmatpush1.msra.mxu0 0.0
    %281 = vmatprep.subr.mxu0 0.0
    %282 = vmatpush1.msra.mxu0 0.0
    %283 = vmatprep.subr.mxu0 0.0
    %284 = vmatpush1.msra.mxu0 0.0
    %285 = vmatprep.subr.mxu0 0.0
    %286 = vmatpush1.msra.mxu0 0.0
    %287 = vmatprep.subr.mxu0 0.0
    %288 = vmatpush1.msra.mxu0 0.0
    %289 = vmatprep.subr.mxu0 0.0
    %290 = vmatpush1.msra.mxu0 0.0
    %291 = vmatprep.mubr.f32.mxu0 0.0
    %292 = vmatmul.mubr.f32.gmra.mrb[0].mxu0 %v200
    %v293 = vpop.f32.mrb[0].mxu0
    %v294 = vadd.f32 %v225, %v293
    %v295 = vpop.f32.mrb[0].mxu0
    %296 = vmatprep.mubr.f32.mxu0 0.0
    %297 = vmatmul.mubr.f32.gmra.mrb[0].mxu0 %v201
    %v298 = vpop.f32.mrb[0].mxu0
    %v299 = vadd.f32 %v225, %v298
    %v300 = vpop.f32.mrb[0].mxu0
    %301 = vdwg.mxu0
    %302 = vst [vmem:[#allocation2 + $0x10] sm:$0xff] %v294
    %303 = vst [vmem:[#allocation2 + $0x18] sm:$0xff] %v299
    %v304 = vld [vmem:[#allocation3] sm:$0xff]
    %v305 = vld [vmem:[#allocation3 + $0x8] sm:$0xff]
    %s306 = scalar_lea.vmem [#allocation8], 256
    %v307 = vld [vmem:[%s306] sm:$0xff]
    %v308 = vld [vmem:[%s306 + $0x8] sm:$0xff]
    %v309 = vld [vmem:[%s306 + $0x10] sm:$0xff]
    %v310 = vld [vmem:[%s306 + $0x18] sm:$0xff]
    %v311 = vld [vmem:[%s306 + $0x20] sm:$0xff]
    %v312 = vld [vmem:[%s306 + $0x28] sm:$0xff]
    %v313 = vld [vmem:[%s306 + $0x30] sm:$0xff]
    %v314 = vld [vmem:[%s306 + $0x38] sm:$0xff]
    %v315 = vld [vmem:[%s306 + $0x40] sm:$0xff]
    %v316 = vld [vmem:[%s306 + $0x48] sm:$0xff]
    %v317 = vld [vmem:[%s306 + $0x50] sm:$0xff]
    %v318 = vld [vmem:[%s306 + $0x58] sm:$0xff]
    %v319 = vld [vmem:[%s306 + $0x60] sm:$0xff]
    %v320 = vld [vmem:[%s306 + $0x68] sm:$0xff]
    %v321 = vld [vmem:[%s306 + $0x70] sm:$0xff]
    %v322 = vld [vmem:[%s306 + $0x78] sm:$0xff]
    %s323 = scalar_lea.vmem %s3, 2
    %v324 = vld [vmem:[%s323] sm:$0x1]
    %v326 = vlaneseq
    %v327 = vshrl.u32 %v326, 7
    %v328 = vsub.s32 0, %v327
    %v329 = vrot.slane %v324, %v328
    %331 = vmatprep.subr.mxu0 0.0
    %332 = vmatpush1.msra.mxu0 %v307
    %333 = vmatprep.subr.mxu0 0.0
    %334 = vmatpush1.msra.mxu0 %v308
    %335 = vmatprep.subr.mxu0 0.0
    %336 = vmatpush1.msra.mxu0 %v309
    %337 = vmatprep.subr.mxu0 0.0
    %338 = vmatpush1.msra.mxu0 %v310
    %339 = vmatprep.subr.mxu0 0.0
    %340 = vmatpush1.msra.mxu0 %v311
    %341 = vmatprep.subr.mxu0 0.0
    %342 = vmatpush1.msra.mxu0 %v312
    %343 = vmatprep.subr.mxu0 0.0
    %344 = vmatpush1.msra.mxu0 %v313
    %345 = vmatprep.subr.mxu0 0.0
    %346 = vmatpush1.msra.mxu0 %v314
    %347 = vmatprep.subr.mxu0 0.0
    %348 = vmatpush1.msra.mxu0 %v315
    %349 = vmatprep.subr.mxu0 0.0
    %350 = vmatpush1.msra.mxu0 %v316
    %351 = vmatprep.subr.mxu0 0.0
    %352 = vmatpush1.msra.mxu0 %v317
    %353 = vmatprep.subr.mxu0 0.0
    %354 = vmatpush1.msra.mxu0 %v318
    %355 = vmatprep.subr.mxu0 0.0
    %356 = vmatpush1.msra.mxu0 %v319
    %357 = vmatprep.subr.mxu0 0.0
    %358 = vmatpush1.msra.mxu0 %v320
    %359 = vmatprep.subr.mxu0 0.0
    %360 = vmatpush1.msra.mxu0 %v321
    %361 = vmatprep.subr.mxu0 0.0
    %362 = vmatpush1.msra.mxu0 %v322
    %363 = vmatprep.subr.mxu0 0.0
    %364 = vmatpush1.msra.mxu0 0.0
    %365 = vmatprep.subr.mxu0 0.0
    %366 = vmatpush1.msra.mxu0 0.0
    %367 = vmatprep.subr.mxu0 0.0
    %368 = vmatpush1.msra.mxu0 0.0
    %369 = vmatprep.subr.mxu0 0.0
    %370 = vmatpush1.msra.mxu0 0.0
    %371 = vmatprep.subr.mxu0 0.0
    %372 = vmatpush1.msra.mxu0 0.0
    %373 = vmatprep.subr.mxu0 0.0
    %374 = vmatpush1.msra.mxu0 0.0
    %375 = vmatprep.subr.mxu0 0.0
    %376 = vmatpush1.msra.mxu0 0.0
    %377 = vmatprep.subr.mxu0 0.0
    %378 = vmatpush1.msra.mxu0 0.0
    %379 = vmatprep.subr.mxu0 0.0
    %380 = vmatpush1.msra.mxu0 0.0
    %381 = vmatprep.subr.mxu0 0.0
    %382 = vmatpush1.msra.mxu0 0.0
    %383 = vmatprep.subr.mxu0 0.0
    %384 = vmatpush1.msra.mxu0 0.0
    %385 = vmatprep.subr.mxu0 0.0
    %386 = vmatpush1.msra.mxu0 0.0
    %387 = vmatprep.subr.mxu0 0.0
    %388 = vmatpush1.msra.mxu0 0.0
    %389 = vmatprep.subr.mxu0 0.0
    %390 = vmatpush1.msra.mxu0 0.0
    %391 = vmatprep.subr.mxu0 0.0
    %392 = vmatpush1.msra.mxu0 0.0
    %393 = vmatprep.subr.mxu0 0.0
    %394 = vmatpush1.msra.mxu0 0.0
    %395 = vmatprep.mubr.f32.mxu0 0.0
    %396 = vmatmul.mubr.f32.gmra.mrb[0].mxu0 %v304
    %v397 = vpop.f32.mrb[0].mxu0
    %v398 = vadd.f32 %v329, %v397
    %v399 = vpop.f32.mrb[0].mxu0
    %400 = vmatprep.mubr.f32.mxu0 0.0
    %401 = vmatmul.mubr.f32.gmra.mrb[0].mxu0 %v305
    %v402 = vpop.f32.mrb[0].mxu0
    %v403 = vadd.f32 %v329, %v402
    %v404 = vpop.f32.mrb[0].mxu0
    %405 = vdwg.mxu0
    %406 = vst [vmem:[#allocation2 + $0x20] sm:$0xff] %v398
    %407 = vst [vmem:[#allocation2 + $0x28] sm:$0xff] %v403
    %v408 = vld [vmem:[#allocation6] sm:$0xff]
    %v409 = vld [vmem:[#allocation6 + $0x8] sm:$0xff]
    %v410 = vld [vmem:[#allocation6 + $0x10] sm:$0xff]
    %v411 = vld [vmem:[#allocation6 + $0x18] sm:$0xff]
    %v412 = vld [vmem:[#allocation2] sm:$0xff]
    %v413 = vld [vmem:[#allocation2 + $0x8] sm:$0xff]
    %v414 = vld [vmem:[#allocation2 + $0x10] sm:$0xff]
    %v415 = vld [vmem:[#allocation2 + $0x18] sm:$0xff]
    %v416 = vld [vmem:[#allocation2 + $0x20] sm:$0xff]
    %v417 = vld [vmem:[#allocation2 + $0x28] sm:$0xff]
    %vm418 = vcmask 392192
    %v420 = vsel %vm418, %v408, 0
    %v423 = vsel %vm418, %v409, 0
    %v426 = vsel %vm418, %v410, 0
    %v429 = vsel %vm418, %v411, 0
    %431 = vmatprep.subr.mxu0 0.0
    %432 = vmatpush1.msra.mxu0 %v412
    %433 = vmatprep.subr.mxu0 0.0
    %434 = vmatpush1.msra.mxu0 %v413
    %435 = vmatprep.subr.mxu0 0.0
    %436 = vmatpush1.msra.mxu0 %v414
    %437 = vmatprep.subr.mxu0 0.0
    %438 = vmatpush1.msra.mxu0 %v415
    %439 = vmatprep.subr.mxu0 0.0
    %440 = vmatpush1.msra.mxu0 %v416
    %441 = vmatprep.subr.mxu0 0.0
    %442 = vmatpush1.msra.mxu0 %v417
    %443 = vmatprep.subr.mxu0 0.0
    %444 = vmatpush1.msra.mxu0 0.0
    %445 = vmatprep.subr.mxu0 0.0
    %446 = vmatpush1.msra.mxu0 0.0
    %447 = vmatprep.subr.mxu0 0.0
    %448 = vmatpush1.msra.mxu0 0.0
    %449 = vmatprep.subr.mxu0 0.0
    %450 = vmatpush1.msra.mxu0 0.0
    %451 = vmatprep.subr.mxu0 0.0
    %452 = vmatpush1.msra.mxu0 0.0
    %453 = vmatprep.subr.mxu0 0.0
    %454 = vmatpush1.msra.mxu0 0.0
    %455 = vmatprep.subr.mxu0 0.0
    %456 = vmatpush1.msra.mxu0 0.0
    %457 = vmatprep.subr.mxu0 0.0
    %458 = vmatpush1.msra.mxu0 0.0
    %459 = vmatprep.subr.mxu0 0.0
    %460 = vmatpush1.msra.mxu0 0.0
    %461 = vmatprep.subr.mxu0 0.0
    %462 = vmatpush1.msra.mxu0 0.0
    %463 = vmatprep.subr.mxu0 0.0
    %464 = vmatpush1.msra.mxu0 0.0
    %465 = vmatprep.subr.mxu0 0.0
    %466 = vmatpush1.msra.mxu0 0.0
    %467 = vmatprep.subr.mxu0 0.0
    %468 = vmatpush1.msra.mxu0 0.0
    %469 = vmatprep.subr.mxu0 0.0
    %470 = vmatpush1.msra.mxu0 0.0
    %471 = vmatprep.subr.mxu0 0.0
    %472 = vmatpush1.msra.mxu0 0.0
    %473 = vmatprep.subr.mxu0 0.0
    %474 = vmatpush1.msra.mxu0 0.0
    %475 = vmatprep.subr.mxu0 0.0
    %476 = vmatpush1.msra.mxu0 0.0
    %477 = vmatprep.subr.mxu0 0.0
    %478 = vmatpush1.msra.mxu0 0.0
    %479 = vmatprep.subr.mxu0 0.0
    %480 = vmatpush1.msra.mxu0 0.0
    %481 = vmatprep.subr.mxu0 0.0
    %482 = vmatpush1.msra.mxu0 0.0
    %483 = vmatprep.subr.mxu0 0.0
    %484 = vmatpush1.msra.mxu0 0.0
    %485 = vmatprep.subr.mxu0 0.0
    %486 = vmatpush1.msra.mxu0 0.0
    %487 = vmatprep.subr.mxu0 0.0
    %488 = vmatpush1.msra.mxu0 0.0
    %489 = vmatprep.subr.mxu0 0.0
    %490 = vmatpush1.msra.mxu0 0.0
    %491 = vmatprep.subr.mxu0 0.0
    %492 = vmatpush1.msra.mxu0 0.0
    %493 = vmatprep.subr.mxu0 0.0
    %494 = vmatpush1.msra.mxu0 0.0
    %495 = vmatprep.mubr.f32.mxu0 0.0
    %496 = vmatmul.mubr.f32.gmra.mrb[0].mxu0 %v420
    %v497 = vpop.f32.mrb[0].mxu0
    %v498 = vadd.f32 0.0, %v497
    %v499 = vpop.f32.mrb[0].mxu0
    %500 = vmatprep.mubr.f32.mxu0 0.0
    %501 = vmatmul.mubr.f32.gmra.mrb[0].mxu0 %v423
    %v502 = vpop.f32.mrb[0].mxu0
    %v503 = vadd.f32 0.0, %v502
    %v504 = vpop.f32.mrb[0].mxu0
    %505 = vmatprep.mubr.f32.mxu0 0.0
    %506 = vmatmul.mubr.f32.gmra.mrb[0].mxu0 %v426
    %v507 = vpop.f32.mrb[0].mxu0
    %v508 = vadd.f32 0.0, %v507
    %v509 = vpop.f32.mrb[0].mxu0
    %510 = vmatprep.mubr.f32.mxu0 0.0
    %511 = vmatmul.mubr.f32.gmra.mrb[0].mxu0 %v429
    %v512 = vpop.f32.mrb[0].mxu0
    %v513 = vadd.f32 0.0, %v512
    %v514 = vpop.f32.mrb[0].mxu0
    %515 = vdwg.mxu0
    %v516 = vld [vmem:[#allocation3] sm:$0xff]
    %v517 = vld [vmem:[#allocation3 + $0x8] sm:$0xff]
    %v518 = vld [vmem:[#allocation3 + $0x10] sm:$0xff]
    %v519 = vld [vmem:[#allocation3 + $0x18] sm:$0xff]
    %v520 = vld [vmem:[#allocation9] sm:$0xff]
    %v521 = vld [vmem:[#allocation9 + $0x8] sm:$0xff]
    %v522 = vld [vmem:[#allocation9 + $0x10] sm:$0xff]
    %v523 = vld [vmem:[#allocation9 + $0x18] sm:$0xff]
    %v524 = vld [vmem:[#allocation9 + $0x20] sm:$0xff]
    %v525 = vld [vmem:[#allocation9 + $0x28] sm:$0xff]
    %v526 = vld [vmem:[#allocation9 + $0x30] sm:$0xff]
    %v527 = vld [vmem:[#allocation9 + $0x38] sm:$0xff]
    %v528 = vld [vmem:[#allocation9 + $0x40] sm:$0xff]
    %v529 = vld [vmem:[#allocation9 + $0x48] sm:$0xff]
    %v530 = vld [vmem:[#allocation9 + $0x50] sm:$0xff]
    %v531 = vld [vmem:[#allocation9 + $0x58] sm:$0xff]
    %v532 = vld [vmem:[#allocation9 + $0x60] sm:$0xff]
    %v533 = vld [vmem:[#allocation9 + $0x68] sm:$0xff]
    %v534 = vld [vmem:[#allocation9 + $0x70] sm:$0xff]
    %v535 = vld [vmem:[#allocation9 + $0x78] sm:$0xff]
    %v536 = vld [vmem:[%s5] sm:$0x1]
    %v538 = vlaneseq
    %v539 = vshrl.u32 %v538, 7
    %v540 = vsub.s32 0, %v539
    %v541 = vrot.slane %v536, %v540
    %543 = vmatprep.subr.mxu0 0.0
    %544 = vmatpush1.msra.mxu0 %v520
    %545 = vmatprep.subr.mxu0 0.0
    %546 = vmatpush1.msra.mxu0 %v521
    %547 = vmatprep.subr.mxu0 0.0
    %548 = vmatpush1.msra.mxu0 %v522
    %549 = vmatprep.subr.mxu0 0.0
    %550 = vmatpush1.msra.mxu0 %v523
    %551 = vmatprep.subr.mxu0 0.0
    %552 = vmatpush1.msra.mxu0 %v524
    %553 = vmatprep.subr.mxu0 0.0
    %554 = vmatpush1.msra.mxu0 %v525
    %555 = vmatprep.subr.mxu0 0.0
    %556 = vmatpush1.msra.mxu0 %v526
    %557 = vmatprep.subr.mxu0 0.0
    %558 = vmatpush1.msra.mxu0 %v527
    %559 = vmatprep.subr.mxu0 0.0
    %560 = vmatpush1.msra.mxu0 %v528
    %561 = vmatprep.subr.mxu0 0.0
    %562 = vmatpush1.msra.mxu0 %v529
    %563 = vmatprep.subr.mxu0 0.0
    %564 = vmatpush1.msra.mxu0 %v530
    %565 = vmatprep.subr.mxu0 0.0
    %566 = vmatpush1.msra.mxu0 %v531
    %567 = vmatprep.subr.mxu0 0.0
    %568 = vmatpush1.msra.mxu0 %v532
    %569 = vmatprep.subr.mxu0 0.0
    %570 = vmatpush1.msra.mxu0 %v533
    %571 = vmatprep.subr.mxu0 0.0
    %572 = vmatpush1.msra.mxu0 %v534
    %573 = vmatprep.subr.mxu0 0.0
    %574 = vmatpush1.msra.mxu0 %v535
    %575 = vmatprep.subr.mxu0 0.0
    %576 = vmatpush1.msra.mxu0 0.0
    %577 = vmatprep.subr.mxu0 0.0
    %578 = vmatpush1.msra.mxu0 0.0
    %579 = vmatprep.subr.mxu0 0.0
    %580 = vmatpush1.msra.mxu0 0.0
    %581 = vmatprep.subr.mxu0 0.0
    %582 = vmatpush1.msra.mxu0 0.0
    %583 = vmatprep.subr.mxu0 0.0
    %584 = vmatpush1.msra.mxu0 0.0
    %585 = vmatprep.subr.mxu0 0.0
    %586 = vmatpush1.msra.mxu0 0.0
    %587 = vmatprep.subr.mxu0 0.0
    %588 = vmatpush1.msra.mxu0 0.0
    %589 = vmatprep.subr.mxu0 0.0
    %590 = vmatpush1.msra.mxu0 0.0
    %591 = vmatprep.subr.mxu0 0.0
    %592 = vmatpush1.msra.mxu0 0.0
    %593 = vmatprep.subr.mxu0 0.0
    %594 = vmatpush1.msra.mxu0 0.0
    %595 = vmatprep.subr.mxu0 0.0
    %596 = vmatpush1.msra.mxu0 0.0
    %597 = vmatprep.subr.mxu0 0.0
    %598 = vmatpush1.msra.mxu0 0.0
    %599 = vmatprep.subr.mxu0 0.0
    %600 = vmatpush1.msra.mxu0 0.0
    %601 = vmatprep.subr.mxu0 0.0
    %602 = vmatpush1.msra.mxu0 0.0
    %603 = vmatprep.subr.mxu0 0.0
    %604 = vmatpush1.msra.mxu0 0.0
    %605 = vmatprep.subr.mxu0 0.0
    %606 = vmatpush1.msra.mxu0 0.0
    %607 = vmatprep.mubr.f32.mxu0 0.0
    %608 = vmatmul.mubr.f32.gmra.mrb[0].mxu0 %v516
    %v609 = vpop.f32.mrb[0].mxu0
    %v610 = vadd.f32 %v541, %v609
    %v611 = vpop.f32.mrb[0].mxu0
    %612 = vmatprep.mubr.f32.mxu0 0.0
    %613 = vmatmul.mubr.f32.gmra.mrb[0].mxu0 %v517
    %v614 = vpop.f32.mrb[0].mxu0
    %v615 = vadd.f32 %v541, %v614
    %v616 = vpop.f32.mrb[0].mxu0
    %617 = vmatprep.mubr.f32.mxu0 0.0
    %618 = vmatmul.mubr.f32.gmra.mrb[0].mxu0 %v518
    %v619 = vpop.f32.mrb[0].mxu0
    %v620 = vadd.f32 %v541, %v619
    %v621 = vpop.f32.mrb[0].mxu0
    %622 = vmatprep.mubr.f32.mxu0 0.0
    %623 = vmatmul.mubr.f32.gmra.mrb[0].mxu0 %v519
    %v624 = vpop.f32.mrb[0].mxu0
    %v625 = vadd.f32 %v541, %v624
    %v626 = vpop.f32.mrb[0].mxu0
    %627 = vdwg.mxu0
    %v628 = vld [vmem:[#allocation11] sm:$0xff]
    %v629 = vld [vmem:[#allocation11 + $0x8] sm:$0xff]
    %v630 = vld [vmem:[#allocation11 + $0x10] sm:$0xff]
    %v631 = vld [vmem:[#allocation11 + $0x18] sm:$0xff]
    %v632 = vld [vmem:[#allocation11 + $0x20] sm:$0xff]
    %v633 = vld [vmem:[#allocation11 + $0x28] sm:$0xff]
    %v634 = vld [vmem:[#allocation11 + $0x30] sm:$0xff]
    %v635 = vld [vmem:[#allocation11 + $0x38] sm:$0xff]
    %v636 = vld [vmem:[#allocation11 + $0x40] sm:$0xff]
    %v637 = vld [vmem:[#allocation11 + $0x48] sm:$0xff]
    %v638 = vld [vmem:[#allocation11 + $0x50] sm:$0xff]
    %v639 = vld [vmem:[#allocation11 + $0x58] sm:$0xff]
    %v640 = vld [vmem:[#allocation11 + $0x60] sm:$0xff]
    %v641 = vld [vmem:[#allocation11 + $0x68] sm:$0xff]
    %v642 = vld [vmem:[#allocation11 + $0x70] sm:$0xff]
    %v643 = vld [vmem:[#allocation11 + $0x78] sm:$0xff]
    %644 = vmatprep.subr.mxu0 0.0
    %645 = vmatpush1.msra.mxu0 %v628
    %646 = vmatprep.subr.mxu0 0.0
    %647 = vmatpush1.msra.mxu0 %v629
    %648 = vmatprep.subr.mxu0 0.0
    %649 = vmatpush1.msra.mxu0 %v630
    %650 = vmatprep.subr.mxu0 0.0
    %651 = vmatpush1.msra.mxu0 %v631
    %652 = vmatprep.subr.mxu0 0.0
    %653 = vmatpush1.msra.mxu0 %v632
    %654 = vmatprep.subr.mxu0 0.0
    %655 = vmatpush1.msra.mxu0 %v633
    %656 = vmatprep.subr.mxu0 0.0
    %657 = vmatpush1.msra.mxu0 %v634
    %658 = vmatprep.subr.mxu0 0.0
    %659 = vmatpush1.msra.mxu0 %v635
    %660 = vmatprep.subr.mxu0 0.0
    %661 = vmatpush1.msra.mxu0 %v636
    %662 = vmatprep.subr.mxu0 0.0
    %663 = vmatpush1.msra.mxu0 %v637
    %664 = vmatprep.subr.mxu0 0.0
    %665 = vmatpush1.msra.mxu0 %v638
    %666 = vmatprep.subr.mxu0 0.0
    %667 = vmatpush1.msra.mxu0 %v639
    %668 = vmatprep.subr.mxu0 0.0
    %669 = vmatpush1.msra.mxu0 %v640
    %670 = vmatprep.subr.mxu0 0.0
    %671 = vmatpush1.msra.mxu0 %v641
    %672 = vmatprep.subr.mxu0 0.0
    %673 = vmatpush1.msra.mxu0 %v642
    %674 = vmatprep.subr.mxu0 0.0
    %675 = vmatpush1.msra.mxu0 %v643
    %676 = vmatprep.subr.mxu0 0.0
    %677 = vmatpush1.msra.mxu0 0.0
    %678 = vmatprep.subr.mxu0 0.0
    %679 = vmatpush1.msra.mxu0 0.0
    %680 = vmatprep.subr.mxu0 0.0
    %681 = vmatpush1.msra.mxu0 0.0
    %682 = vmatprep.subr.mxu0 0.0
    %683 = vmatpush1.msra.mxu0 0.0
    %684 = vmatprep.subr.mxu0 0.0
    %685 = vmatpush1.msra.mxu0 0.0
    %686 = vmatprep.subr.mxu0 0.0
    %687 = vmatpush1.msra.mxu0 0.0
    %688 = vmatprep.subr.mxu0 0.0
    %689 = vmatpush1.msra.mxu0 0.0
    %690 = vmatprep.subr.mxu0 0.0
    %691 = vmatpush1.msra.mxu0 0.0
    %692 = vmatprep.subr.mxu0 0.0
    %693 = vmatpush1.msra.mxu0 0.0
    %694 = vmatprep.subr.mxu0 0.0
    %695 = vmatpush1.msra.mxu0 0.0
    %696 = vmatprep.subr.mxu0 0.0
    %697 = vmatpush1.msra.mxu0 0.0
    %698 = vmatprep.subr.mxu0 0.0
    %699 = vmatpush1.msra.mxu0 0.0
    %700 = vmatprep.subr.mxu0 0.0
    %701 = vmatpush1.msra.mxu0 0.0
    %702 = vmatprep.subr.mxu0 0.0
    %703 = vmatpush1.msra.mxu0 0.0
    %704 = vmatprep.subr.mxu0 0.0
    %705 = vmatpush1.msra.mxu0 0.0
    %706 = vmatprep.subr.mxu0 0.0
    %707 = vmatpush1.msra.mxu0 0.0
    %708 = vmatprep.mubr.f32.mxu0 0.0
    %709 = vmatmul.mubr.f32.gmra.mrb[0].mxu0 %v498
    %v710 = vpop.f32.mrb[0].mxu0
    %v711 = vadd.f32 0.0, %v710
    %v712 = vpop.f32.mrb[0].mxu0
    %713 = vmatprep.mubr.f32.mxu0 0.0
    %714 = vmatmul.mubr.f32.gmra.mrb[0].mxu0 %v503
    %v715 = vpop.f32.mrb[0].mxu0
    %v716 = vadd.f32 0.0, %v715
    %v717 = vpop.f32.mrb[0].mxu0
    %718 = vmatprep.mubr.f32.mxu0 0.0
    %719 = vmatmul.mubr.f32.gmra.mrb[0].mxu0 %v508
    %v720 = vpop.f32.mrb[0].mxu0
    %v721 = vadd.f32 0.0, %v720
    %v722 = vpop.f32.mrb[0].mxu0
    %723 = vmatprep.mubr.f32.mxu0 0.0
    %724 = vmatmul.mubr.f32.gmra.mrb[0].mxu0 %v513
    %v725 = vpop.f32.mrb[0].mxu0
    %v726 = vadd.f32 0.0, %v725
    %v727 = vpop.f32.mrb[0].mxu0
    %728 = vdwg.mxu0
    %v729 = vadd.f32 %v610, %v711
    %v730 = vadd.f32 %v615, %v716
    %v731 = vadd.f32 %v620, %v721
    %v732 = vadd.f32 %v625, %v726
    %v733 = vld [vmem:[%s7] sm:$0x1]
    %v735 = vlaneseq
    %v736 = vshrl.u32 %v735, 7
    %v737 = vsub.s32 0, %v736
    %v738 = vrot.slane %v733, %v737
    %v740 = vadd.f32 %v729, %v738
    %v741 = vadd.f32 %v730, %v738
    %v742 = vadd.f32 %v731, %v738
    %v743 = vadd.f32 %v732, %v738
    %v744 = vadd.f32 %v516, %v740
    %v745 = vadd.f32 %v517, %v741
    %v746 = vadd.f32 %v518, %v742
    %v747 = vadd.f32 %v519, %v743
    %vm748 = vcmp.ge.f32.partialorder %v744, 0.0
    %vm749 = vcmp.ge.f32.partialorder %v745, 0.0
    %vm750 = vcmp.ge.f32.partialorder %v746, 0.0
    %vm751 = vcmp.ge.f32.partialorder %v747, 0.0
    %v752 = vmul.f32 %v744, 0.01
    %v753 = vmul.f32 %v745, 0.01
    %v754 = vmul.f32 %v746, 0.01
    %v755 = vmul.f32 %v747, 0.01
    %v756 = vsel %vm748, %v744, %v752
    %v757 = vsel %vm749, %v745, %v753
    %v758 = vsel %vm750, %v746, %v754
    %v759 = vsel %vm751, %v747, %v755
    %760 = vst [vmem:[#allocation12] sm:$0xff] %v756
    %761 = vst [vmem:[#allocation12 + $0x8] sm:$0xff] %v757
    %762 = vst [vmem:[#allocation12 + $0x10] sm:$0xff] %v758
    %763 = vst [vmem:[#allocation12 + $0x18] sm:$0xff] %v759
    // Predicated region
    $region54: #{tpu_custom_call.1} parent=1 // pred_check
      _
    $region55: #{tpu_custom_call.1} parent=1 // pred_check_branch
      %765 = sbr.rel (0) target = $region57
    $region56: #{tpu_custom_call.1} parent=1 // pred_region
      %s767 = ssub.s32 512, 512
      %768 = vsyncadd [#allocation5], %s767
      %s769 = sshll.u32 [#allocation12], 4
      %s770 = int_to_ptr.vmem [resolvable:$true] %s769
      %775 = dma.vmem_to_hbm [thread:$0]  %s770, 512, %s8, [#allocation5], 128, 128, 8
    $region57: #{tpu_custom_call.1} parent=1 // pred_fallthru
      _
    // Predicated region
    $region58: #{tpu_custom_call.1} parent=1 // pred_check
      _
    $region59: #{tpu_custom_call.1} parent=1 // pred_check_branch
      %777 = sbr.rel (0) target = $region61
    $region60: #{tpu_custom_call.1} parent=1 // pred_region
      %778 = dma.done [#allocation5], 512
    $region61: #{tpu_custom_call.1} parent=1 // pred_fallthru
      _
    %779 = vsyncpa [#allocation4], 1
    %780 = vsyncpa [#allocation7], 1
    %781 = vsyncpa [#allocation10], 1
    %782 = vsyncpa [#allocation5], 1

</llo_original>
